<compile_context>
chip_gen: v7x
topology: tpu7x:2x2x1
jax: 0.10.0
libtpu: 0.0.40
codegen_flags: <defaults>
</compile_context>

<pallas_src>
from functools import partial

import jax
import jax.numpy as jnp
from jax.experimental import pallas as pl
from jax.experimental.pallas import tpu as pltpu

LANE = 128
SUBLANE = 8


def _round_up(x, m):
    return ((x + m - 1) // m) * m


def _mlp_T(yT, w1T, b1c, w2T, b2c):
    """Feature-major MLP: batch samples live on the lane axis.

    yT : (fin,  TB)   state tile, rows >= in_features are zero
    w1T: (width, fin) = w1.T zero-padded on the input-feature axis
    b1c: (width, 1)
    w2T: (fout, width) = w2.T zero-padded on the output-feature axis
    b2c: (fout, 1)     zero-padded
    Returns (fout, TB); rows >= out_features are exactly zero.
    """
    h = jnp.dot(w1T, yT, preferred_element_type=jnp.float32) + b1c    # MXU, (width, TB)
    h = jnp.tanh(h)                                                   # EUP, lane-dense
    return jnp.dot(w2T, h, preferred_element_type=jnp.float32) + b2c  # MXU, (fout, TB)


def node_fwd_kernel(yT_ref, w1T_ref, b1_ref, w2T_ref, b2_ref, o_ref):
    o_ref[...] = _mlp_T(
        yT_ref[...].astype(jnp.float32),
        w1T_ref[...].astype(jnp.float32),
        b1_ref[...].astype(jnp.float32),
        w2T_ref[...].astype(jnp.float32),
        b2_ref[...].astype(jnp.float32),
    ).astype(o_ref.dtype)


def _euler_kernel(yT_ref, w1T_ref, b1_ref, w2T_ref, b2_ref, o_ref, *, num_steps, dt):
    w1T = w1T_ref[...].astype(jnp.float32)
    b1c = b1_ref[...].astype(jnp.float32)
    w2T = w2T_ref[...].astype(jnp.float32)
    b2c = b2_ref[...].astype(jnp.float32)

    def step(_, yT):
        # Padded feature rows stay exactly zero: _mlp_T returns zero there.
        return yT + dt * _mlp_T(yT, w1T, b1c, w2T, b2c)

    yT_final = jax.lax.fori_loop(0, num_steps, step, yT_ref[...].astype(jnp.float32))
    # State is stored to HBM only once per tile (amortized over num_steps).
    o_ref[...] = yT_final.astype(o_ref.dtype)


def _prep_params(w1, b1, w2, b2):
    """Transpose weights to feature-major layout and pad feature axes to a
    sublane group (zero padding is exact: padded columns/rows contribute 0)."""
    in_features, width = w1.shape
    out_features = w2.shape[1]
    fin = _round_up(in_features, SUBLANE)
    fout = _round_up(out_features, SUBLANE)
    w1T = jnp.zeros((width, fin), w1.dtype).at[:, :in_features].set(w1.T)
    b1c = b1.reshape(width, 1)
    w2T = jnp.zeros((fout, width), w2.dtype).at[:out_features, :].set(w2.T)
    b2c = jnp.zeros((fout, 1), b2.dtype).at[:out_features, :].set(
        b2.reshape(out_features, 1))
    return w1T, b1c, w2T, b2c, fin, fout


def _prep_state(y, fin, tb):
    """y (batch, in) -> feature-major, zero-padded (fin, batch_pad)."""
    batch, in_features = y.shape
    batch_pad = _round_up(batch, tb)
    yT = jnp.zeros((fin, batch_pad), y.dtype).at[:in_features, :batch].set(y.T)
    return yT, batch_pad


def _batch_tile(batch, block_batch):
    return _round_up(min(block_batch, batch), LANE)


@partial(jax.jit, static_argnames=("block_batch",))
def node_forward(t, y, w1, b1, w2, b2, *, block_batch=8192):
    """Pallas equivalent of NODE.forward(t, y) -> net(y). `t` is unused."""
    del t  # NODE ignores t
    batch, _ = y.shape
    width = w1.shape[1]
    out_features = w2.shape[1]

    w1T, b1c, w2T, b2c, fin, fout = _prep_params(w1, b1, w2, b2)
    tb = _batch_tile(batch, block_batch)
    yT, batch_pad = _prep_state(y, fin, tb)

    outT = pl.pallas_call(
        node_fwd_kernel,
        out_shape=jax.ShapeDtypeStruct((fout, batch_pad), y.dtype),
        grid_spec=pltpu.PrefetchScalarGridSpec(
            num_scalar_prefetch=0,
            grid=(batch_pad // tb,),
            in_specs=[
                pl.BlockSpec((fin, tb), lambda i: (0, i)),
                # Constant block index -> weights/biases stay resident in VMEM.
                pl.BlockSpec((width, fin), lambda i: (0, 0)),
                pl.BlockSpec((width, 1), lambda i: (0, 0)),
                pl.BlockSpec((fout, width), lambda i: (0, 0)),
                pl.BlockSpec((fout, 1), lambda i: (0, 0)),
            ],
            out_specs=pl.BlockSpec((fout, tb), lambda i: (0, i)),
        ),
        compiler_params=pltpu.CompilerParams(
            dimension_semantics=("parallel",)),
    )(yT, w1T, b1c, w2T, b2c)
    return outT[:out_features, :batch].T


@partial(jax.jit, static_argnames=("num_steps", "dt", "block_batch"))
def node_integrate_euler(y0, w1, b1, w2, b2, *, num_steps, dt, block_batch=8192):
    """Fused explicit-Euler solve: y_{n+1} = y_n + dt * net(y_n), N steps in ONE
    pallas_call (state + weights stay in VMEM/vregs across all steps)."""
    batch, in_features = y0.shape
    width = w1.shape[1]
    out_features = w2.shape[1]
    assert out_features == in_features, "ODE func must map state -> state"

    w1T, b1c, w2T, b2c, fin, fout = _prep_params(w1, b1, w2, b2)
    assert fin == fout
    tb = _batch_tile(batch, block_batch)
    yT, batch_pad = _prep_state(y0, fin, tb)

    kernel = partial(_euler_kernel, num_steps=num_steps, dt=float(dt))
    outT = pl.pallas_call(
        kernel,
        out_shape=jax.ShapeDtypeStruct((fin, batch_pad), y0.dtype),
        grid_spec=pltpu.PrefetchScalarGridSpec(
            num_scalar_prefetch=0,
            grid=(batch_pad // tb,),
            in_specs=[
                pl.BlockSpec((fin, tb), lambda i: (0, i)),
                pl.BlockSpec((width, fin), lambda i: (0, 0)),
                pl.BlockSpec((width, 1), lambda i: (0, 0)),
                pl.BlockSpec((fout, width), lambda i: (0, 0)),
                pl.BlockSpec((fout, 1), lambda i: (0, 0)),
            ],
            out_specs=pl.BlockSpec((fin, tb), lambda i: (0, i)),
        ),
        compiler_params=pltpu.CompilerParams(
            dimension_semantics=("parallel",)),
    )(yT, w1T, b1c, w2T, b2c)
    return outT[:in_features, :batch].T


def init_params(key, in_layers=3, width=32, out_layers=3, dtype=jnp.float32):
    """PyTorch-Linear-style uniform init; weights stored transposed vs. torch."""
    k1, k2, k3, k4 = jax.random.split(key, 4)
    bound1 = 1.0 / jnp.sqrt(in_layers)
    bound2 = 1.0 / jnp.sqrt(width)
    w1 = jax.random.uniform(k1, (in_layers, width), dtype, -bound1, bound1)
    b1 = jax.random.uniform(k2, (1, width), dtype, -bound1, bound1)
    w2 = jax.random.uniform(k3, (width, out_layers), dtype, -bound2, bound2)
    b2 = jax.random.uniform(k4, (1, out_layers), dtype, -bound2, bound2)
    return w1, b1, w2, b2


if __name__ == "__main__":
    # TODO(synk): NODE.num_calls (Python-side counter) has no kernel equivalent.
    key = jax.random.PRNGKey(0)
    k_params, k_y, k_y2 = jax.random.split(key, 3)

    in_layers, width, out_layers = 3, 32, 3
    batch = 8

    w1, b1, w2, b2 = init_params(k_params, in_layers, width, out_layers)
    y = jax.random.normal(k_y, (batch, in_layers), jnp.float32)
    t = jnp.float32(0.0)  # unused, mirrors NODE.forward signature

    # --- single derivative evaluation (the module's forward) ---
    out = jax.block_until_ready(node_forward(t, y, w1, b1, w2, b2))
    ref = jnp.tanh(y @ w1 + b1) @ w2 + b2
    assert out.shape == (batch, out_layers)
    assert jnp.allclose(out, ref, atol=1e-3, rtol=1e-3)

    # --- forward with a batch that needs padding to the tile size ---
    y_odd = jax.random.normal(k_y2, (10, in_layers), jnp.float32)
    out_odd = jax.block_until_ready(node_forward(t, y_odd, w1, b1, w2, b2))
    ref_odd = jnp.tanh(y_odd @ w1 + b1) @ w2 + b2
    assert out_odd.shape == (10, out_layers)
    assert jnp.allclose(out_odd, ref_odd, atol=1e-3, rtol=1e-3)

    # --- fused multi-step Euler solve (step fusion) ---
    num_steps, dt = 4, 0.05
    y_solved = jax.block_until_ready(
        node_integrate_euler(y, w1, b1, w2, b2, num_steps=num_steps, dt=dt))
    y_ref = y
    for _ in range(num_steps):
        y_ref = y_ref + dt * (jnp.tanh(y_ref @ w1 + b1) @ w2 + b2)
    assert y_solved.shape == y.shape
    assert jnp.allclose(y_solved, y_ref, atol=1e-3, rtol=1e-3)

    print("KERNEL_OK")
</pallas_src>

<mosaic_0001>
module attributes {stable_mosaic.version = 11 : i64} {
  func.func @node_fwd_kernel(%arg0: i32, %arg1: memref<8x128xf32, #tpu.memory_space<vmem>>, %arg2: memref<32x8xf32, #tpu.memory_space<vmem>>, %arg3: memref<32x1xf32, #tpu.memory_space<vmem>>, %arg4: memref<8x32xf32, #tpu.memory_space<vmem>>, %arg5: memref<8x1xf32, #tpu.memory_space<vmem>>, %arg6: memref<8x128xf32, #tpu.memory_space<vmem>>) attributes {dimension_semantics = [#tpu.dimension_semantics<parallel>], iteration_bounds = array<i64: 1>, scalar_prefetch = 0 : i64, scratch_operands = 0 : i64, tpu.core_type = #tpu.core_type<tc>, window_params = [{transform_indices = @transform_0, window_bounds = array<i64: 8, 128>}, {pipeline_mode = #tpu.pipeline_mode<synchronous>, transform_indices = @transform_1, window_bounds = array<i64: 32, 8>}, {pipeline_mode = #tpu.pipeline_mode<synchronous>, transform_indices = @transform_2, window_bounds = array<i64: 32, 1>}, {pipeline_mode = #tpu.pipeline_mode<synchronous>, transform_indices = @transform_3, window_bounds = array<i64: 8, 32>}, {pipeline_mode = #tpu.pipeline_mode<synchronous>, transform_indices = @transform_4, window_bounds = array<i64: 8, 1>}, {transform_indices = @transform_5, window_bounds = array<i64: 8, 128>}]} {
    %c0 = arith.constant 0 : index
    %c0_0 = arith.constant 0 : index
    %0 = vector.load %arg1[%c0, %c0_0] : memref<8x128xf32, #tpu.memory_space<vmem>>, vector<8x128xf32>
    %c0_1 = arith.constant 0 : index
    %c0_2 = arith.constant 0 : index
    %1 = vector.load %arg2[%c0_1, %c0_2] : memref<32x8xf32, #tpu.memory_space<vmem>>, vector<32x8xf32>
    %c0_3 = arith.constant 0 : index
    %c0_4 = arith.constant 0 : index
    %2 = vector.load %arg3[%c0_3, %c0_4] : memref<32x1xf32, #tpu.memory_space<vmem>>, vector<32x1xf32>
    %c0_5 = arith.constant 0 : index
    %c0_6 = arith.constant 0 : index
    %3 = vector.load %arg4[%c0_5, %c0_6] : memref<8x32xf32, #tpu.memory_space<vmem>>, vector<8x32xf32>
    %c0_7 = arith.constant 0 : index
    %c0_8 = arith.constant 0 : index
    %4 = vector.load %arg5[%c0_7, %c0_8] : memref<8x1xf32, #tpu.memory_space<vmem>>, vector<8x1xf32>
    %cst = arith.constant dense<0.000000e+00> : vector<32x128xf32>
    %5 = tpu.matmul %1, %0, %cst {dimension_numbers = #tpu.dot_dimension_numbers<[1], [0], [0], [1], [0, 0, 1, 1], [], []>} : vector<32x8xf32>, vector<8x128xf32>, vector<32x128xf32> -> vector<32x128xf32>
    %6 = vector.broadcast %2 : vector<32x1xf32> to vector<32x128xf32>
    %7 = arith.addf %5, %6 : vector<32x128xf32>
    %8 = math.tanh %7 : vector<32x128xf32>
    %cst_9 = arith.constant dense<0.000000e+00> : vector<8x128xf32>
    %9 = tpu.matmul %3, %8, %cst_9 {dimension_numbers = #tpu.dot_dimension_numbers<[1], [0], [0], [1], [0, 0, 1, 1], [], []>} : vector<8x32xf32>, vector<32x128xf32>, vector<8x128xf32> -> vector<8x128xf32>
    %10 = vector.broadcast %4 : vector<8x1xf32> to vector<8x128xf32>
    %11 = arith.addf %9, %10 : vector<8x128xf32>
    %c0_10 = arith.constant 0 : index
    %c0_11 = arith.constant 0 : index
    %12 = vector.load %arg6[%c0_10, %c0_11] : memref<8x128xf32, #tpu.memory_space<vmem>>, vector<8x128xf32>
    tpu.vector_store %arg6[%c0_10, %c0_11], %11 {strides = array<i32>} : memref<8x128xf32, #tpu.memory_space<vmem>>, vector<8x128xf32>,
    return
  }
  func.func @transform_0(%arg0: i32) -> (i32, i32) {
    %c0_i32 = arith.constant 0 : i32
    %c0_i32_0 = arith.constant 0 : i32
    return %c0_i32, %arg0 : i32, i32
  }
  func.func @transform_1(%arg0: i32) -> (i32, i32) {
    %c0_i32 = arith.constant 0 : i32
    %c0_i32_0 = arith.constant 0 : i32
    %c0_i32_1 = arith.constant 0 : i32
    return %c0_i32, %c0_i32_0 : i32, i32
  }
  func.func @transform_2(%arg0: i32) -> (i32, i32) {
    %c0_i32 = arith.constant 0 : i32
    %c0_i32_0 = arith.constant 0 : i32
    %c0_i32_1 = arith.constant 0 : i32
    return %c0_i32, %c0_i32_0 : i32, i32
  }
  func.func @transform_3(%arg0: i32) -> (i32, i32) {
    %c0_i32 = arith.constant 0 : i32
    %c0_i32_0 = arith.constant 0 : i32
    %c0_i32_1 = arith.constant 0 : i32
    return %c0_i32, %c0_i32_0 : i32, i32
  }
  func.func @transform_4(%arg0: i32) -> (i32, i32) {
    %c0_i32 = arith.constant 0 : i32
    %c0_i32_0 = arith.constant 0 : i32
    %c0_i32_1 = arith.constant 0 : i32
    return %c0_i32, %c0_i32_0 : i32, i32
  }
  func.func @transform_5(%arg0: i32) -> (i32, i32) {
    %c0_i32 = arith.constant 0 : i32
    %c0_i32_0 = arith.constant 0 : i32
    return %c0_i32, %arg0 : i32, i32
  }
}

</mosaic_0001>

<llo_original>
// kernel: node_forward.1
$region0: #{node_forward.1}
  #allocation0 [shape = 'u32[]', space=smem, size = 0x4, offset = 0x4, fixed_abs, tag = 'smem constant byte address 0x4 - core index']
  #allocation1 [shape = 'u32[144,128]{1,0:T(1,128)}', space=vmem, size = 0x12000, scoped, tag = 'internal scratch']
  %s0 = inlined_call_operand.vmem [shape: f32[8,128], index: 0, kind: input, shape index: {}]
  %s1 = inlined_call_operand.vmem [shape: f32[32,8], index: 1, kind: input, shape index: {}]
  %s2 = inlined_call_operand.vmem [shape: f32[32,1], index: 2, kind: input, shape index: {}]
  %s3 = inlined_call_operand.vmem [shape: f32[8,32], index: 3, kind: input, shape index: {}]
  %s4 = inlined_call_operand.vmem [shape: f32[8,1], index: 4, kind: input, shape index: {}]
  %s5 = inlined_call_operand.vmem [shape: f32[8,128], index: 5, kind: output, shape index: {}]
  %s6 = sld [smem:[#allocation0]]
  $region30: #{node_forward.1} parent=0
    _
  %s8 = ssub.s32 1, %s6
  %s9 = scalar_select 0, %s8, %s6
  // Predicated region
  $region2: #{node_forward.1} parent=0 // pred_check
    _
  $region3: #{node_forward.1} parent=0 // pred_check_branch
    %11 = sbr.rel (0) target = $region5
  $region4: #{node_forward.1} parent=0 // pred_region
    _
  $region5: #{node_forward.1} parent=0 // pred_fallthru
    _
  // Predicated region
  $region6: #{node_forward.1} parent=0 // pred_check
    _
  $region7: #{node_forward.1} parent=0 // pred_check_branch
    %13 = sbr.rel (0) target = $region9
  $region8: #{node_forward.1} parent=0 // pred_region
    _
  $region9: #{node_forward.1} parent=0 // pred_fallthru
    _
  // Predicated region
  $region10: #{node_forward.1} parent=0 // pred_check
    _
  $region11: #{node_forward.1} parent=0 // pred_check_branch
    %15 = sbr.rel (0) target = $region13
  $region12: #{node_forward.1} parent=0 // pred_region
    _
  $region13: #{node_forward.1} parent=0 // pred_fallthru
    _
  // Predicated region
  $region14: #{node_forward.1} parent=0 // pred_check
    _
  $region15: #{node_forward.1} parent=0 // pred_check_branch
    %17 = sbr.rel (0) target = $region17
  $region16: #{node_forward.1} parent=0 // pred_region
    _
  $region17: #{node_forward.1} parent=0 // pred_fallthru
    _
  // Predicated region
  $region18: #{node_forward.1} parent=0 // pred_check
    _
  $region19: #{node_forward.1} parent=0 // pred_check_branch
    %19 = sbr.rel (0) target = $region21
  $region20: #{node_forward.1} parent=0 // pred_region
    _
  $region21: #{node_forward.1} parent=0 // pred_fallthru
    _
  %v20 = vld [vmem:[%s0] sm:$0xff]
  %v21 = vld [vmem:[%s1] sm:$0xff]
  %v22 = vld [vmem:[%s1 + $0x8] sm:$0xff]
  %v23 = vld [vmem:[%s1 + $0x10] sm:$0xff]
  %v24 = vld [vmem:[%s1 + $0x18] sm:$0xff]
  %v25 = vld [vmem:[%s2] sm:$0xff]
  %v26 = vld [vmem:[%s2 + $0x8] sm:$0xff]
  %v27 = vld [vmem:[%s2 + $0x10] sm:$0xff]
  %v28 = vld [vmem:[%s2 + $0x18] sm:$0xff]
  %v29 = vld [vmem:[%s3] sm:$0xff]
  %v30 = vld [vmem:[%s4] sm:$0xff]
  %32 = vset.pattern.permute.xlu0 0
  %33 = vperm.xlu0 %32, %v25
  %v34 = vpop.permute.xlu0 %33
  %37 = vset.pattern.permute.xlu0 0
  %38 = vperm.xlu0 %37, %v26
  %v39 = vpop.permute.xlu0 %38
  %42 = vset.pattern.permute.xlu0 0
  %43 = vperm.xlu0 %42, %v27
  %v44 = vpop.permute.xlu0 %43
  %47 = vset.pattern.permute.xlu0 0
  %48 = vperm.xlu0 %47, %v28
  %v49 = vpop.permute.xlu0 %48
  %vm51 = vcmask 64512
  %v53 = vsel %vm51, %v21, 0
  %v56 = vsel %vm51, %v22, 0
  %v59 = vsel %vm51, %v23, 0
  %v62 = vsel %vm51, %v24, 0
  %64 = vmatprep.subr.mxu0 0.0
  %65 = vmatpush1.msra.mxu0 %v20
  %66 = vmatprep.subr.mxu0 0.0
  %67 = vmatpush1.msra.mxu0 0.0
  %68 = vmatprep.subr.mxu0 0.0
  %69 = vmatpush1.msra.mxu0 0.0
  %70 = vmatprep.subr.mxu0 0.0
  %71 = vmatpush1.msra.mxu0 0.0
  %72 = vmatprep.subr.mxu0 0.0
  %73 = vmatpush1.msra.mxu0 0.0
  %74 = vmatprep.subr.mxu0 0.0
  %75 = vmatpush1.msra.mxu0 0.0
  %76 = vmatprep.subr.mxu0 0.0
  %77 = vmatpush1.msra.mxu0 0.0
  %78 = vmatprep.subr.mxu0 0.0
  %79 = vmatpush1.msra.mxu0 0.0
  %80 = vmatprep.subr.mxu0 0.0
  %81 = vmatpush1.msra.mxu0 0.0
  %82 = vmatprep.subr.mxu0 0.0
  %83 = vmatpush1.msra.mxu0 0.0
  %84 = vmatprep.subr.mxu0 0.0
  %85 = vmatpush1.msra.mxu0 0.0
  %86 = vmatprep.subr.mxu0 0.0
  %87 = vmatpush1.msra.mxu0 0.0
  %88 = vmatprep.subr.mxu0 0.0
  %89 = vmatpush1.msra.mxu0 0.0
  %90 = vmatprep.subr.mxu0 0.0
  %91 = vmatpush1.msra.mxu0 0.0
  %92 = vmatprep.subr.mxu0 0.0
  %93 = vmatpush1.msra.mxu0 0.0
  %94 = vmatprep.subr.mxu0 0.0
  %95 = vmatpush1.msra.mxu0 0.0
  %96 = vmatprep.subr.mxu0 0.0
  %97 = vmatpush1.msra.mxu0 0.0
  %98 = vmatprep.subr.mxu0 0.0
  %99 = vmatpush1.msra.mxu0 0.0
  %100 = vmatprep.subr.mxu0 0.0
  %101 = vmatpush1.msra.mxu0 0.0
  %102 = vmatprep.subr.mxu0 0.0
  %103 = vmatpush1.msra.mxu0 0.0
  %104 = vmatprep.subr.mxu0 0.0
  %105 = vmatpush1.msra.mxu0 0.0
  %106 = vmatprep.subr.mxu0 0.0
  %107 = vmatpush1.msra.mxu0 0.0
  %108 = vmatprep.subr.mxu0 0.0
  %109 = vmatpush1.msra.mxu0 0.0
  %110 = vmatprep.subr.mxu0 0.0
  %111 = vmatpush1.msra.mxu0 0.0
  %112 = vmatprep.subr.mxu0 0.0
  %113 = vmatpush1.msra.mxu0 0.0
  %114 = vmatprep.subr.mxu0 0.0
  %115 = vmatpush1.msra.mxu0 0.0
  %116 = vmatprep.subr.mxu0 0.0
  %117 = vmatpush1.msra.mxu0 0.0
  %118 = vmatprep.subr.mxu0 0.0
  %119 = vmatpush1.msra.mxu0 0.0
  %120 = vmatprep.subr.mxu0 0.0
  %121 = vmatpush1.msra.mxu0 0.0
  %122 = vmatprep.subr.mxu0 0.0
  %123 = vmatpush1.msra.mxu0 0.0
  %124 = vmatprep.subr.mxu0 0.0
  %125 = vmatpush1.msra.mxu0 0.0
  %126 = vmatprep.subr.mxu0 0.0
  %127 = vmatpush1.msra.mxu0 0.0
  %128 = vmatprep.mubr.f32.mxu0 0.0
  %129 = vmatmul.mubr.f32.gmra.mrb[0].mxu0 %v53
  %v130 = vpop.f32.mrb[0].mxu0
  %v131 = vadd.f32 %v34, %v130
  %v132 = vpop.f32.mrb[0].mxu0
  %133 = vmatprep.mubr.f32.mxu0 0.0
  %134 = vmatmul.mubr.f32.gmra.mrb[0].mxu0 %v56
  %v135 = vpop.f32.mrb[0].mxu0
  %v136 = vadd.f32 %v39, %v135
  %v137 = vpop.f32.mrb[0].mxu0
  %138 = vmatprep.mubr.f32.mxu0 0.0
  %139 = vmatmul.mubr.f32.gmra.mrb[0].mxu0 %v59
  %v140 = vpop.f32.mrb[0].mxu0
  %v141 = vadd.f32 %v44, %v140
  %v142 = vpop.f32.mrb[0].mxu0
  %143 = vmatprep.mubr.f32.mxu0 0.0
  %144 = vmatmul.mubr.f32.gmra.mrb[0].mxu0 %v62
  %v145 = vpop.f32.mrb[0].mxu0
  %v146 = vadd.f32 %v49, %v145
  %v147 = vpop.f32.mrb[0].mxu0
  %148 = vdwg.mxu0
  %v149 = vtanh.pop %v131
  %v150 = vtanh.pop %v136
  %v151 = vtanh.pop %v141
  %v152 = vtanh.pop %v146
  %154 = vset.pattern.permute.xlu0 0
  %155 = vperm.xlu0 %154, %v30
  %v156 = vpop.permute.xlu0 %155
  %vm158 = vcmask 261120
  %v160 = vsel %vm158, %v29, 0
  %162 = vmatprep.subr.mxu0 0.0
  %163 = vmatpush1.msra.mxu0 %v149
  %164 = vmatprep.subr.mxu0 0.0
  %165 = vmatpush1.msra.mxu0 %v150
  %166 = vmatprep.subr.mxu0 0.0
  %167 = vmatpush1.msra.mxu0 %v151
  %168 = vmatprep.subr.mxu0 0.0
  %169 = vmatpush1.msra.mxu0 %v152
  %170 = vmatprep.subr.mxu0 0.0
  %171 = vmatpush1.msra.mxu0 0.0
  %172 = vmatprep.subr.mxu0 0.0
  %173 = vmatpush1.msra.mxu0 0.0
  %174 = vmatprep.subr.mxu0 0.0
  %175 = vmatpush1.msra.mxu0 0.0
  %176 = vmatprep.subr.mxu0 0.0
  %177 = vmatpush1.msra.mxu0 0.0
  %178 = vmatprep.subr.mxu0 0.0
  %179 = vmatpush1.msra.mxu0 0.0
  %180 = vmatprep.subr.mxu0 0.0
  %181 = vmatpush1.msra.mxu0 0.0
  %182 = vmatprep.subr.mxu0 0.0
  %183 = vmatpush1.msra.mxu0 0.0
  %184 = vmatprep.subr.mxu0 0.0
  %185 = vmatpush1.msra.mxu0 0.0
  %186 = vmatprep.subr.mxu0 0.0
  %187 = vmatpush1.msra.mxu0 0.0
  %188 = vmatprep.subr.mxu0 0.0
  %189 = vmatpush1.msra.mxu0 0.0
  %190 = vmatprep.subr.mxu0 0.0
  %191 = vmatpush1.msra.mxu0 0.0
  %192 = vmatprep.subr.mxu0 0.0
  %193 = vmatpush1.msra.mxu0 0.0
  %194 = vmatprep.subr.mxu0 0.0
  %195 = vmatpush1.msra.mxu0 0.0
  %196 = vmatprep.subr.mxu0 0.0
  %197 = vmatpush1.msra.mxu0 0.0
  %198 = vmatprep.subr.mxu0 0.0
  %199 = vmatpush1.msra.mxu0 0.0
  %200 = vmatprep.subr.mxu0 0.0
  %201 = vmatpush1.msra.mxu0 0.0
  %202 = vmatprep.subr.mxu0 0.0
  %203 = vmatpush1.msra.mxu0 0.0
  %204 = vmatprep.subr.mxu0 0.0
  %205 = vmatpush1.msra.mxu0 0.0
  %206 = vmatprep.subr.mxu0 0.0
  %207 = vmatpush1.msra.mxu0 0.0
  %208 = vmatprep.subr.mxu0 0.0
  %209 = vmatpush1.msra.mxu0 0.0
  %210 = vmatprep.subr.mxu0 0.0
  %211 = vmatpush1.msra.mxu0 0.0
  %212 = vmatprep.subr.mxu0 0.0
  %213 = vmatpush1.msra.mxu0 0.0
  %214 = vmatprep.subr.mxu0 0.0
  %215 = vmatpush1.msra.mxu0 0.0
  %216 = vmatprep.subr.mxu0 0.0
  %217 = vmatpush1.msra.mxu0 0.0
  %218 = vmatprep.subr.mxu0 0.0
  %219 = vmatpush1.msra.mxu0 0.0
  %220 = vmatprep.subr.mxu0 0.0
  %221 = vmatpush1.msra.mxu0 0.0
  %222 = vmatprep.subr.mxu0 0.0
  %223 = vmatpush1.msra.mxu0 0.0
  %224 = vmatprep.subr.mxu0 0.0
  %225 = vmatpush1.msra.mxu0 0.0
  %226 = vmatprep.mubr.f32.mxu0 0.0
  %227 = vmatmul.mubr.f32.gmra.mrb[0].mxu0 %v160
  %v228 = vpop.f32.mrb[0].mxu0
  %v229 = vadd.f32 %v156, %v228
  %v230 = vpop.f32.mrb[0].mxu0
  %231 = vdwg.mxu0
  %232 = vst [vmem:[%s5] sm:$0xff] %v229
  // Predicated region
  $region22: #{node_forward.1} parent=0 // pred_check
    _
  $region23: #{node_forward.1} parent=0 // pred_check_branch
    %234 = sbr.rel (0) target = $region25
  $region24: #{node_forward.1} parent=0 // pred_region
    _
  $region25: #{node_forward.1} parent=0 // pred_fallthru
    _
  // Predicated region
  $region26: #{node_forward.1} parent=0 // pred_check
    _
  $region27: #{node_forward.1} parent=0 // pred_check_branch
    %236 = sbr.rel (0) target = $region29
  $region28: #{node_forward.1} parent=0 // pred_region
    _
  $region29: #{node_forward.1} parent=0 // pred_fallthru
    _

</llo_original>
